<compile_context>
chip_gen: v7x
topology: tpu7x:2x2x1
jax: 0.10.0
libtpu: 0.0.40
codegen_flags: <defaults>
</compile_context>

<pallas_src>
import jax
import jax.numpy as jnp
from jax.experimental import pallas as pl
from jax.experimental.pallas import tpu as pltpu

K = 3          # number of mixture components
DIM = 256      # feature dimension (module default)
N = 8          # batch size for the smoke test

_TN_MAX = 512  # N-tile cap: fits v5e's 16 MiB / v7x's 32 MiB default scoped VMEM.
               # TODO(synk): on v6e (128 MiB VMEM, single TC) TN=2048-4096 plus
               # vmem_limit_bytes would shave a few % of grid-step overhead.

_SQRT1_2 = 0.7071067811865476
_LOG_2PI = 1.8378770664093453
_LOG_HALF = -0.6931471805599453
_NEG_BIG = -3.0e38

# Abramowitz & Stegun 7.1.26 (for x >= 0):
#   erfc(x) ~= t*(A1 + t*(A2 + t*(A3 + t*(A4 + t*A5)))) * exp(-x^2), t = 1/(1 + P*x)
_ERFC_P = 0.3275911
_A1 = 0.254829592
_A2 = -0.284496736
_A3 = 1.421413741
_A4 = -1.453152027
_A5 = 1.061405429


def _log_cdf_and_quad(w):
    """w = (mu - x) * (sqrt(1/2)/cov), shape (TN, D).

    Returns (sum_d log(max(erfc(w)/2, 1e-15)), sum_d w^2), both (TN, 1).
    The 0.5 and the 1e-15 clamp are folded into constants; the reciprocal for t
    is exact (approx EUP recip would destroy the tail accuracy)."""
    d = w.shape[-1]
    w2 = w * w                                    # reused for the Gaussian quad form
    ax = jnp.abs(w)
    t = 1.0 / (1.0 + _ERFC_P * ax)
    poly = t * (_A1 + t * (_A2 + t * (_A3 + t * (_A4 + t * _A5))))
    ans = poly * jnp.exp(-w2)
    erfc_w = jnp.where(w >= 0.0, ans, 2.0 - ans)
    lq = jnp.log(jnp.maximum(erfc_w, 2e-15))      # = log(max(erfc/2, 1e-15)) - log(1/2)
    log_cdf = jnp.sum(lq, axis=-1, keepdims=True) + d * _LOG_HALF
    quad = jnp.sum(w2, axis=-1, keepdims=True)
    return log_cdf, quad


def copula_pass1_kernel(const_ref,                                   # SMEM (K,)
                        x_ref, y_ref, mu_x_ref, mu_y_ref,
                        sicov_x_ref, sicov_y_ref,                    # VMEM
                        phi_x_ref, phi_y_ref, gauss_ref):            # (TN, K) outs
    x = x_ref[...]                                                   # (TN, D)
    y = y_ref[...]
    n_comp = mu_x_ref.shape[0]
    for k in range(n_comp):                                          # static unroll
        # w = (mu - x)/(sqrt(2)*cov): erfc argument, and w^2 is half the Gaussian
        # quadratic form -> one sub + one mul per element, no divides.
        wx = (mu_x_ref[k:k + 1, :] - x) * sicov_x_ref[k:k + 1, :]
        wy = (mu_y_ref[k:k + 1, :] - y) * sicov_y_ref[k:k + 1, :]
        lcx, qx = _log_cdf_and_quad(wx)
        lcy, qy = _log_cdf_and_quad(wy)
        phi_x_ref[:, k:k + 1] = lcx
        phi_y_ref[:, k:k + 1] = lcy
        # diag-Gaussian log-pdfs + log mixture weights; z-independent part
        # prefolded into const_ref[k].
        gauss_ref[:, k:k + 1] = const_ref[k] - (qx + qy)


def copula_pass2_kernel(params_ref,                                  # SMEM (2,)
                        phi_x_ref, phi_y_ref, gauss_ref,             # (TN, K)
                        negmax_x_ref, negmax_y_ref,                  # (1, K)
                        lse_ref):                                    # (TN, 1) out
    theta = params_ref[0]                                            # clamped >= 1
    inv_theta = params_ref[1]                                        # precomputed 1/theta
    # batch-global clamp: phi.clamp(max=phi[phi<0].max()); negmax is computed in
    # the wrapper over ALL tiles so the result is tile-size invariant.
    log_u = jnp.minimum(phi_x_ref[...], negmax_x_ref[...])           # (TN, K), < 0
    log_v = jnp.minimum(phi_y_ref[...], negmax_y_ref[...])
    # Gumbel copula in log space (overflow-safe for large theta), one exp:
    #   c = -((-log_u)^theta + (-log_v)^theta)^(1/theta)
    la = theta * jnp.log(-log_u)
    lb = theta * jnp.log(-log_v)
    mab = jnp.maximum(la, lb)
    c = -jnp.exp(inv_theta * (mab + jnp.log(1.0 + jnp.exp(-jnp.abs(la - lb)))))
    lk = c + gauss_ref[...]                                          # (TN, K)
    # logsumexp over the K mixture components (lane reduction, XLU)
    m = jnp.max(lk, axis=-1, keepdims=True)
    lse_ref[...] = m + jnp.log(jnp.sum(jnp.exp(lk - m), axis=-1, keepdims=True))


def _round_up(a, b):
    return (a + b - 1) // b * b


@jax.jit
def copula_loss(x, y, theta, pi_x, pi_y, mu_x, mu_y, log_cov_x, log_cov_y):
    f32 = jnp.float32
    x = x.astype(f32)
    y = y.astype(f32)
    n, d = x.shape
    k = mu_x.shape[0]

    # ---- parameter preprocessing (fused with the pallas_calls under jit) ----
    log_pi_x = jax.nn.log_softmax(pi_x.astype(f32), axis=-1)
    log_pi_y = jax.nn.log_softmax(pi_y.astype(f32), axis=-1)
    cov_x = jnp.maximum(jax.nn.softplus(log_cov_x.astype(f32)), 1e-15)
    cov_y = jnp.maximum(jax.nn.softplus(log_cov_y.astype(f32)), 1e-15)
    theta_c = jnp.maximum(theta.astype(f32).reshape(1), 1.0)         # gumbel: clamp(min=1)
    params = jnp.concatenate([theta_c, 1.0 / theta_c])               # (2,)  -> SMEM
    const = (log_pi_x + log_pi_y
             - jnp.sum(jnp.log(cov_x), axis=-1)
             - jnp.sum(jnp.log(cov_y), axis=-1)
             - d * _LOG_2PI).astype(f32)                             # (K,)  -> SMEM
    sicov_x = (_SQRT1_2 / cov_x).astype(f32)                         # (K, D)
    sicov_y = (_SQRT1_2 / cov_y).astype(f32)
    mu_x = mu_x.astype(f32)
    mu_y = mu_y.astype(f32)

    # ---- tile the batch dimension ----
    tn = min(_TN_MAX, _round_up(n, 8))
    n_pad = _round_up(n, tn)
    num_tiles = n_pad // tn
    if n_pad != n:
        x = jnp.pad(x, ((0, n_pad - n), (0, 0)))
        y = jnp.pad(y, ((0, n_pad - n), (0, 0)))

    parallel = pltpu.CompilerParams(dimension_semantics=("parallel",))
    row_spec = lambda i, s: (i, 0)     # prefetch ref is a trailing positional arg
    full_spec = lambda i, s: (0, 0)

    # ---- pass 1: log-CDFs + Gaussian log-pdf parts, lane-packed over K ----
    phi_x, phi_y, gauss = pl.pallas_call(
        copula_pass1_kernel,
        grid_spec=pltpu.PrefetchScalarGridSpec(
            num_scalar_prefetch=1,
            grid=(num_tiles,),
            in_specs=[
                pl.BlockSpec((tn, d), row_spec),      # x
                pl.BlockSpec((tn, d), row_spec),      # y
                pl.BlockSpec((k, d), full_spec),      # mu_x   (fetched once)
                pl.BlockSpec((k, d), full_spec),      # mu_y
                pl.BlockSpec((k, d), full_spec),      # sicov_x
                pl.BlockSpec((k, d), full_spec),      # sicov_y
            ],
            out_specs=[
                pl.BlockSpec((tn, k), row_spec),      # phi_x
                pl.BlockSpec((tn, k), row_spec),      # phi_y
                pl.BlockSpec((tn, k), row_spec),      # gauss (= const - quad)
            ]),
        out_shape=[jax.ShapeDtypeStruct((n_pad, k), f32)] * 3,
        compiler_params=parallel,
    )(const, x, y, mu_x, mu_y, sicov_x, sicov_y)

    # ---- batch-global max of negative phi per component/side (two-pass clamp) ----
    row_valid = (jnp.arange(n_pad) < n)[:, None]                     # (n_pad, 1)

    def _neg_max(phi):
        masked = jnp.where(row_valid & (phi < 0.0), phi, _NEG_BIG)
        m = jnp.max(masked, axis=0, keepdims=True)                   # (1, K)
        # torch raises if no phi < 0 exists; fall back to a tiny negative value
        # so log(-phi) stays finite (documented behavioral divergence).
        return jnp.where(m <= -1.0e38, -1e-15, m)

    negmax_x = _neg_max(phi_x)
    negmax_y = _neg_max(phi_y)

    # ---- pass 2: clamp + Gumbel copula + logsumexp over K, per row ----
    lse = pl.pallas_call(
        copula_pass2_kernel,
        grid_spec=pltpu.PrefetchScalarGridSpec(
            num_scalar_prefetch=1,
            grid=(num_tiles,),
            in_specs=[
                pl.BlockSpec((tn, k), row_spec),      # phi_x
                pl.BlockSpec((tn, k), row_spec),      # phi_y
                pl.BlockSpec((tn, k), row_spec),      # gauss
                pl.BlockSpec((1, k), full_spec),      # negmax_x
                pl.BlockSpec((1, k), full_spec),      # negmax_y
            ],
            out_specs=pl.BlockSpec((tn, 1), row_spec)),
        out_shape=jax.ShapeDtypeStruct((n_pad, 1), f32),
        compiler_params=parallel,
    )(params, phi_x, phi_y, gauss, negmax_x, negmax_y)

    loss = jnp.sum(jnp.where(row_valid, lse, 0.0)) / n
    return -loss


if __name__ == "__main__":
    # Deterministic parameter init, mirroring the module __init__.
    theta = jnp.ones((1,), jnp.float32)
    pi_x = jnp.ones((K,), jnp.float32) / K
    pi_y = jnp.ones((K,), jnp.float32) / K
    mu_x = jnp.zeros((K, DIM), jnp.float32)
    mu_y = jnp.zeros((K, DIM), jnp.float32)
    log_cov_x = jnp.ones((K, DIM), jnp.float32) * -4.0
    log_cov_y = jnp.ones((K, DIM), jnp.float32) * -4.0

    key = jax.random.PRNGKey(0)
    kx, ky = jax.random.split(key)
    x = jax.random.normal(kx, (N, DIM), jnp.float32)
    y = jax.random.normal(ky, (N, DIM), jnp.float32)

    loss = copula_loss(x, y, theta, pi_x, pi_y, mu_x, mu_y, log_cov_x, log_cov_y)
    loss = jax.block_until_ready(loss)

    assert loss.ndim == 0
    assert bool(jnp.isfinite(loss)), f"non-finite loss: {loss}"
    print("KERNEL_OK")
</pallas_src>

<mosaic_0001>
module attributes {stable_mosaic.version = 11 : i64} {
  func.func @copula_pass2_kernel(%arg0: i32, %arg1: memref<2xf32, #tpu.memory_space<smem>>, %arg2: memref<8x3xf32, #tpu.memory_space<vmem>>, %arg3: memref<8x3xf32, #tpu.memory_space<vmem>>, %arg4: memref<8x3xf32, #tpu.memory_space<vmem>>, %arg5: memref<1x3xf32, #tpu.memory_space<vmem>>, %arg6: memref<1x3xf32, #tpu.memory_space<vmem>>, %arg7: memref<8x1xf32, #tpu.memory_space<vmem>>) attributes {dimension_semantics = [#tpu.dimension_semantics<parallel>], iteration_bounds = array<i64: 1>, scalar_prefetch = 1 : i64, scratch_operands = 0 : i64, tpu.core_type = #tpu.core_type<tc>, window_params = [{transform_indices = @transform_0, window_bounds = array<i64: 8, 3>}, {transform_indices = @transform_1, window_bounds = array<i64: 8, 3>}, {transform_indices = @transform_2, window_bounds = array<i64: 8, 3>}, {pipeline_mode = #tpu.pipeline_mode<synchronous>, transform_indices = @transform_3, window_bounds = array<i64: 1, 3>}, {pipeline_mode = #tpu.pipeline_mode<synchronous>, transform_indices = @transform_4, window_bounds = array<i64: 1, 3>}, {transform_indices = @transform_5, window_bounds = array<i64: 8, 1>}]} {
    %c0 = arith.constant 0 : index
    %0 = memref.load %arg1[%c0] : memref<2xf32, #tpu.memory_space<smem>>
    %c1 = arith.constant 1 : index
    %1 = memref.load %arg1[%c1] : memref<2xf32, #tpu.memory_space<smem>>
    %c0_0 = arith.constant 0 : index
    %c0_1 = arith.constant 0 : index
    %2 = vector.load %arg2[%c0_0, %c0_1] : memref<8x3xf32, #tpu.memory_space<vmem>>, vector<8x3xf32>
    %c0_2 = arith.constant 0 : index
    %c0_3 = arith.constant 0 : index
    %3 = vector.load %arg5[%c0_2, %c0_3] : memref<1x3xf32, #tpu.memory_space<vmem>>, vector<1x3xf32>
    %4 = vector.broadcast %3 : vector<1x3xf32> to vector<8x3xf32>
    %5 = arith.minimumf %2, %4 : vector<8x3xf32>
    %c0_4 = arith.constant 0 : index
    %c0_5 = arith.constant 0 : index
    %6 = vector.load %arg3[%c0_4, %c0_5] : memref<8x3xf32, #tpu.memory_space<vmem>>, vector<8x3xf32>
    %c0_6 = arith.constant 0 : index
    %c0_7 = arith.constant 0 : index
    %7 = vector.load %arg6[%c0_6, %c0_7] : memref<1x3xf32, #tpu.memory_space<vmem>>, vector<1x3xf32>
    %8 = vector.broadcast %7 : vector<1x3xf32> to vector<8x3xf32>
    %9 = arith.minimumf %6, %8 : vector<8x3xf32>
    %cst = arith.constant 0.000000e+00 : f32
    %10 = vector.broadcast %cst : f32 to vector<8x3xf32>
    %11 = arith.subf %10, %5 : vector<8x3xf32>
    %12 = math.log %11 : vector<8x3xf32>
    %13 = vector.broadcast %0 : f32 to vector<8x3xf32>
    %14 = arith.mulf %13, %12 : vector<8x3xf32>
    %cst_8 = arith.constant 0.000000e+00 : f32
    %15 = vector.broadcast %cst_8 : f32 to vector<8x3xf32>
    %16 = arith.subf %15, %9 : vector<8x3xf32>
    %17 = math.log %16 : vector<8x3xf32>
    %18 = vector.broadcast %0 : f32 to vector<8x3xf32>
    %19 = arith.mulf %18, %17 : vector<8x3xf32>
    %20 = arith.maximumf %14, %19 : vector<8x3xf32>
    %21 = arith.subf %14, %19 : vector<8x3xf32>
    %22 = math.absf %21 : vector<8x3xf32>
    %cst_9 = arith.constant 0.000000e+00 : f32
    %23 = vector.broadcast %cst_9 : f32 to vector<8x3xf32>
    %24 = arith.subf %23, %22 : vector<8x3xf32>
    %25 = math.exp %24 : vector<8x3xf32>
    %cst_10 = arith.constant 1.000000e+00 : f32
    %26 = vector.broadcast %cst_10 : f32 to vector<8x3xf32>
    %27 = arith.addf %26, %25 : vector<8x3xf32>
    %28 = math.log %27 : vector<8x3xf32>
    %29 = arith.addf %20, %28 : vector<8x3xf32>
    %30 = vector.broadcast %1 : f32 to vector<8x3xf32>
    %31 = arith.mulf %30, %29 : vector<8x3xf32>
    %32 = math.exp %31 : vector<8x3xf32>
    %cst_11 = arith.constant 0.000000e+00 : f32
    %33 = vector.broadcast %cst_11 : f32 to vector<8x3xf32>
    %34 = arith.subf %33, %32 : vector<8x3xf32>
    %c0_12 = arith.constant 0 : index
    %c0_13 = arith.constant 0 : index
    %35 = vector.load %arg4[%c0_12, %c0_13] : memref<8x3xf32, #tpu.memory_space<vmem>>, vector<8x3xf32>
    %36 = arith.addf %34, %35 : vector<8x3xf32>
    %cst_14 = arith.constant dense<0xFF800000> : vector<8xf32>
    %37 = vector.multi_reduction <maximumf>, %36, %cst_14 [1] : vector<8x3xf32> to vector<8xf32>
    %38 = vector.shape_cast %37 : vector<8xf32> to vector<8x1xf32>
    %39 = vector.broadcast %38 : vector<8x1xf32> to vector<8x3xf32>
    %40 = arith.subf %36, %39 : vector<8x3xf32>
    %41 = math.exp %40 : vector<8x3xf32>
    %cst_15 = arith.constant dense<0.000000e+00> : vector<8xf32>
    %42 = vector.multi_reduction <add>, %41, %cst_15 [1] : vector<8x3xf32> to vector<8xf32>
    %43 = vector.shape_cast %42 : vector<8xf32> to vector<8x1xf32>
    %44 = math.log %43 : vector<8x1xf32>
    %45 = arith.addf %38, %44 : vector<8x1xf32>
    %c0_16 = arith.constant 0 : index
    %c0_17 = arith.constant 0 : index
    %46 = vector.load %arg7[%c0_16, %c0_17] : memref<8x1xf32, #tpu.memory_space<vmem>>, vector<8x1xf32>
    tpu.vector_store %arg7[%c0_16, %c0_17], %45 {strides = array<i32>} : memref<8x1xf32, #tpu.memory_space<vmem>>, vector<8x1xf32>,
    return
  }
  func.func @transform_0(%arg0: i32, %arg1: memref<2xf32, #tpu.memory_space<smem>>) -> (i32, i32) {
    %c0_i32 = arith.constant 0 : i32
    %c0_i32_0 = arith.constant 0 : i32
    return %arg0, %c0_i32 : i32, i32
  }
  func.func @transform_1(%arg0: i32, %arg1: memref<2xf32, #tpu.memory_space<smem>>) -> (i32, i32) {
    %c0_i32 = arith.constant 0 : i32
    %c0_i32_0 = arith.constant 0 : i32
    return %arg0, %c0_i32 : i32, i32
  }
  func.func @transform_2(%arg0: i32, %arg1: memref<2xf32, #tpu.memory_space<smem>>) -> (i32, i32) {
    %c0_i32 = arith.constant 0 : i32
    %c0_i32_0 = arith.constant 0 : i32
    return %arg0, %c0_i32 : i32, i32
  }
  func.func @transform_3(%arg0: i32, %arg1: memref<2xf32, #tpu.memory_space<smem>>) -> (i32, i32) {
    %c0_i32 = arith.constant 0 : i32
    %c0_i32_0 = arith.constant 0 : i32
    %c0_i32_1 = arith.constant 0 : i32
    return %c0_i32, %c0_i32_0 : i32, i32
  }
  func.func @transform_4(%arg0: i32, %arg1: memref<2xf32, #tpu.memory_space<smem>>) -> (i32, i32) {
    %c0_i32 = arith.constant 0 : i32
    %c0_i32_0 = arith.constant 0 : i32
    %c0_i32_1 = arith.constant 0 : i32
    return %c0_i32, %c0_i32_0 : i32, i32
  }
  func.func @transform_5(%arg0: i32, %arg1: memref<2xf32, #tpu.memory_space<smem>>) -> (i32, i32) {
    %c0_i32 = arith.constant 0 : i32
    %c0_i32_0 = arith.constant 0 : i32
    return %arg0, %c0_i32 : i32, i32
  }
}

module attributes {stable_mosaic.version = 11 : i64} {
  func.func @copula_pass1_kernel(%arg0: i32, %arg1: memref<3xf32, #tpu.memory_space<smem>>, %arg2: memref<8x256xf32, #tpu.memory_space<vmem>>, %arg3: memref<8x256xf32, #tpu.memory_space<vmem>>, %arg4: memref<3x256xf32, #tpu.memory_space<vmem>>, %arg5: memref<3x256xf32, #tpu.memory_space<vmem>>, %arg6: memref<3x256xf32, #tpu.memory_space<vmem>>, %arg7: memref<3x256xf32, #tpu.memory_space<vmem>>, %arg8: memref<8x3xf32, #tpu.memory_space<vmem>>, %arg9: memref<8x3xf32, #tpu.memory_space<vmem>>, %arg10: memref<8x3xf32, #tpu.memory_space<vmem>>) attributes {dimension_semantics = [#tpu.dimension_semantics<parallel>], iteration_bounds = array<i64: 1>, scalar_prefetch = 1 : i64, scratch_operands = 0 : i64, tpu.core_type = #tpu.core_type<tc>, window_params = [{transform_indices = @transform_0, window_bounds = array<i64: 8, 256>}, {transform_indices = @transform_1, window_bounds = array<i64: 8, 256>}, {pipeline_mode = #tpu.pipeline_mode<synchronous>, transform_indices = @transform_2, window_bounds = array<i64: 3, 256>}, {pipeline_mode = #tpu.pipeline_mode<synchronous>, transform_indices = @transform_3, window_bounds = array<i64: 3, 256>}, {pipeline_mode = #tpu.pipeline_mode<synchronous>, transform_indices = @transform_4, window_bounds = array<i64: 3, 256>}, {pipeline_mode = #tpu.pipeline_mode<synchronous>, transform_indices = @transform_5, window_bounds = array<i64: 3, 256>}, {transform_indices = @transform_6, window_bounds = array<i64: 8, 3>}, {transform_indices = @transform_7, window_bounds = array<i64: 8, 3>}, {transform_indices = @transform_8, window_bounds = array<i64: 8, 3>}]} {
    %c0 = arith.constant 0 : index
    %c0_0 = arith.constant 0 : index
    %0 = vector.load %arg2[%c0, %c0_0] : memref<8x256xf32, #tpu.memory_space<vmem>>, vector<8x256xf32>
    %c0_1 = arith.constant 0 : index
    %c0_2 = arith.constant 0 : index
    %1 = vector.load %arg3[%c0_1, %c0_2] : memref<8x256xf32, #tpu.memory_space<vmem>>, vector<8x256xf32>
    %c0_3 = arith.constant 0 : index
    %c0_4 = arith.constant 0 : index
    %2 = vector.load %arg4[%c0_3, %c0_4] : memref<3x256xf32, #tpu.memory_space<vmem>>, vector<1x256xf32>
    %3 = vector.broadcast %2 : vector<1x256xf32> to vector<8x256xf32>
    %4 = arith.subf %3, %0 : vector<8x256xf32>
    %c0_5 = arith.constant 0 : index
    %c0_6 = arith.constant 0 : index
    %5 = vector.load %arg6[%c0_5, %c0_6] : memref<3x256xf32, #tpu.memory_space<vmem>>, vector<1x256xf32>
    %6 = vector.broadcast %5 : vector<1x256xf32> to vector<8x256xf32>
    %7 = arith.mulf %4, %6 : vector<8x256xf32>
    %c0_7 = arith.constant 0 : index
    %c0_8 = arith.constant 0 : index
    %8 = vector.load %arg5[%c0_7, %c0_8] : memref<3x256xf32, #tpu.memory_space<vmem>>, vector<1x256xf32>
    %9 = vector.broadcast %8 : vector<1x256xf32> to vector<8x256xf32>
    %10 = arith.subf %9, %1 : vector<8x256xf32>
    %c0_9 = arith.constant 0 : index
    %c0_10 = arith.constant 0 : index
    %11 = vector.load %arg7[%c0_9, %c0_10] : memref<3x256xf32, #tpu.memory_space<vmem>>, vector<1x256xf32>
    %12 = vector.broadcast %11 : vector<1x256xf32> to vector<8x256xf32>
    %13 = arith.mulf %10, %12 : vector<8x256xf32>
    %14 = arith.mulf %7, %7 : vector<8x256xf32>
    %15 = math.absf %7 : vector<8x256xf32>
    %cst = arith.constant 0.327591091 : f32
    %16 = vector.broadcast %cst : f32 to vector<8x256xf32>
    %17 = arith.mulf %16, %15 : vector<8x256xf32>
    %cst_11 = arith.constant 1.000000e+00 : f32
    %18 = vector.broadcast %cst_11 : f32 to vector<8x256xf32>
    %19 = arith.addf %18, %17 : vector<8x256xf32>
    %cst_12 = arith.constant 1.000000e+00 : f32
    %20 = vector.broadcast %cst_12 : f32 to vector<8x256xf32>
    %21 = arith.divf %20, %19 : vector<8x256xf32>
    %cst_13 = arith.constant 1.06140542 : f32
    %22 = vector.broadcast %cst_13 : f32 to vector<8x256xf32>
    %23 = arith.mulf %21, %22 : vector<8x256xf32>
    %cst_14 = arith.constant -1.45315206 : f32
    %24 = vector.broadcast %cst_14 : f32 to vector<8x256xf32>
    %25 = arith.addf %24, %23 : vector<8x256xf32>
    %26 = arith.mulf %21, %25 : vector<8x256xf32>
    %cst_15 = arith.constant 1.42141378 : f32
    %27 = vector.broadcast %cst_15 : f32 to vector<8x256xf32>
    %28 = arith.addf %27, %26 : vector<8x256xf32>
    %29 = arith.mulf %21, %28 : vector<8x256xf32>
    %cst_16 = arith.constant -0.284496725 : f32
    %30 = vector.broadcast %cst_16 : f32 to vector<8x256xf32>
    %31 = arith.addf %30, %29 : vector<8x256xf32>
    %32 = arith.mulf %21, %31 : vector<8x256xf32>
    %cst_17 = arith.constant 0.254829586 : f32
    %33 = vector.broadcast %cst_17 : f32 to vector<8x256xf32>
    %34 = arith.addf %33, %32 : vector<8x256xf32>
    %35 = arith.mulf %21, %34 : vector<8x256xf32>
    %cst_18 = arith.constant 0.000000e+00 : f32
    %36 = vector.broadcast %cst_18 : f32 to vector<8x256xf32>
    %37 = arith.subf %36, %14 : vector<8x256xf32>
    %38 = math.exp %37 : vector<8x256xf32>
    %39 = arith.mulf %35, %38 : vector<8x256xf32>
    %cst_19 = arith.constant 0.000000e+00 : f32
    %40 = vector.broadcast %cst_19 : f32 to vector<8x256xf32>
    %41 = arith.cmpf oge, %7, %40 : vector<8x256xf32>
    %cst_20 = arith.constant 2.000000e+00 : f32
    %42 = vector.broadcast %cst_20 : f32 to vector<8x256xf32>
    %43 = arith.subf %42, %39 : vector<8x256xf32>
    %44 = arith.select %41, %39, %43 : vector<8x256xi1>, vector<8x256xf32>
    %cst_21 = arith.constant 2.000000e-15 : f32
    %45 = vector.broadcast %cst_21 : f32 to vector<8x256xf32>
    %46 = arith.maximumf %44, %45 : vector<8x256xf32>
    %47 = math.log %46 : vector<8x256xf32>
    %cst_22 = arith.constant dense<0.000000e+00> : vector<8xf32>
    %48 = vector.multi_reduction <add>, %47, %cst_22 [1] : vector<8x256xf32> to vector<8xf32>
    %49 = vector.shape_cast %48 : vector<8xf32> to vector<8x1xf32>
    %cst_23 = arith.constant -177.445679 : f32
    %50 = vector.broadcast %cst_23 : f32 to vector<8x1xf32>
    %51 = arith.addf %49, %50 : vector<8x1xf32>
    %cst_24 = arith.constant dense<0.000000e+00> : vector<8xf32>
    %52 = vector.multi_reduction <add>, %14, %cst_24 [1] : vector<8x256xf32> to vector<8xf32>
    %53 = vector.shape_cast %52 : vector<8xf32> to vector<8x1xf32>
    %54 = arith.mulf %13, %13 : vector<8x256xf32>
    %55 = math.absf %13 : vector<8x256xf32>
    %cst_25 = arith.constant 0.327591091 : f32
    %56 = vector.broadcast %cst_25 : f32 to vector<8x256xf32>
    %57 = arith.mulf %56, %55 : vector<8x256xf32>
    %cst_26 = arith.constant 1.000000e+00 : f32
    %58 = vector.broadcast %cst_26 : f32 to vector<8x256xf32>
    %59 = arith.addf %58, %57 : vector<8x256xf32>
    %cst_27 = arith.constant 1.000000e+00 : f32
    %60 = vector.broadcast %cst_27 : f32 to vector<8x256xf32>
    %61 = arith.divf %60, %59 : vector<8x256xf32>
    %cst_28 = arith.constant 1.06140542 : f32
    %62 = vector.broadcast %cst_28 : f32 to vector<8x256xf32>
    %63 = arith.mulf %61, %62 : vector<8x256xf32>
    %cst_29 = arith.constant -1.45315206 : f32
    %64 = vector.broadcast %cst_29 : f32 to vector<8x256xf32>
    %65 = arith.addf %64, %63 : vector<8x256xf32>
    %66 = arith.mulf %61, %65 : vector<8x256xf32>
    %cst_30 = arith.constant 1.42141378 : f32
    %67 = vector.broadcast %cst_30 : f32 to vector<8x256xf32>
    %68 = arith.addf %67, %66 : vector<8x256xf32>
    %69 = arith.mulf %61, %68 : vector<8x256xf32>
    %cst_31 = arith.constant -0.284496725 : f32
    %70 = vector.broadcast %cst_31 : f32 to vector<8x256xf32>
    %71 = arith.addf %70, %69 : vector<8x256xf32>
    %72 = arith.mulf %61, %71 : vector<8x256xf32>
    %cst_32 = arith.constant 0.254829586 : f32
    %73 = vector.broadcast %cst_32 : f32 to vector<8x256xf32>
    %74 = arith.addf %73, %72 : vector<8x256xf32>
    %75 = arith.mulf %61, %74 : vector<8x256xf32>
    %cst_33 = arith.constant 0.000000e+00 : f32
    %76 = vector.broadcast %cst_33 : f32 to vector<8x256xf32>
    %77 = arith.subf %76, %54 : vector<8x256xf32>
    %78 = math.exp %77 : vector<8x256xf32>
    %79 = arith.mulf %75, %78 : vector<8x256xf32>
    %cst_34 = arith.constant 0.000000e+00 : f32
    %80 = vector.broadcast %cst_34 : f32 to vector<8x256xf32>
    %81 = arith.cmpf oge, %13, %80 : vector<8x256xf32>
    %cst_35 = arith.constant 2.000000e+00 : f32
    %82 = vector.broadcast %cst_35 : f32 to vector<8x256xf32>
    %83 = arith.subf %82, %79 : vector<8x256xf32>
    %84 = arith.select %81, %79, %83 : vector<8x256xi1>, vector<8x256xf32>
    %cst_36 = arith.constant 2.000000e-15 : f32
    %85 = vector.broadcast %cst_36 : f32 to vector<8x256xf32>
    %86 = arith.maximumf %84, %85 : vector<8x256xf32>
    %87 = math.log %86 : vector<8x256xf32>
    %cst_37 = arith.constant dense<0.000000e+00> : vector<8xf32>
    %88 = vector.multi_reduction <add>, %87, %cst_37 [1] : vector<8x256xf32> to vector<8xf32>
    %89 = vector.shape_cast %88 : vector<8xf32> to vector<8x1xf32>
    %cst_38 = arith.constant -177.445679 : f32
    %90 = vector.broadcast %cst_38 : f32 to vector<8x1xf32>
    %91 = arith.addf %89, %90 : vector<8x1xf32>
    %cst_39 = arith.constant dense<0.000000e+00> : vector<8xf32>
    %92 = vector.multi_reduction <add>, %54, %cst_39 [1] : vector<8x256xf32> to vector<8xf32>
    %93 = vector.shape_cast %92 : vector<8xf32> to vector<8x1xf32>
    %c0_40 = arith.constant 0 : index
    %c0_41 = arith.constant 0 : index
    %94 = vector.load %arg8[%c0_40, %c0_41] : memref<8x3xf32, #tpu.memory_space<vmem>>, vector<8x1xf32>
    tpu.vector_store %arg8[%c0_40, %c0_41], %51 {strides = array<i32>} : memref<8x3xf32, #tpu.memory_space<vmem>>, vector<8x1xf32>,
    %c0_42 = arith.constant 0 : index
    %c0_43 = arith.constant 0 : index
    %95 = vector.load %arg9[%c0_42, %c0_43] : memref<8x3xf32, #tpu.memory_space<vmem>>, vector<8x1xf32>
    tpu.vector_store %arg9[%c0_42, %c0_43], %91 {strides = array<i32>} : memref<8x3xf32, #tpu.memory_space<vmem>>, vector<8x1xf32>,
    %c0_44 = arith.constant 0 : index
    %96 = memref.load %arg1[%c0_44] : memref<3xf32, #tpu.memory_space<smem>>
    %97 = arith.addf %53, %93 : vector<8x1xf32>
    %98 = vector.broadcast %96 : f32 to vector<8x1xf32>
    %99 = arith.subf %98, %97 : vector<8x1xf32>
    %c0_45 = arith.constant 0 : index
    %c0_46 = arith.constant 0 : index
    %100 = vector.load %arg10[%c0_45, %c0_46] : memref<8x3xf32, #tpu.memory_space<vmem>>, vector<8x1xf32>
    tpu.vector_store %arg10[%c0_45, %c0_46], %99 {strides = array<i32>} : memref<8x3xf32, #tpu.memory_space<vmem>>, vector<8x1xf32>,
    %c1 = arith.constant 1 : index
    %c0_47 = arith.constant 0 : index
    %101 = vector.load %arg4[%c1, %c0_47] : memref<3x256xf32, #tpu.memory_space<vmem>>, vector<1x256xf32>
    %102 = vector.broadcast %101 : vector<1x256xf32> to vector<8x256xf32>
    %103 = arith.subf %102, %0 : vector<8x256xf32>
    %c1_48 = arith.constant 1 : index
    %c0_49 = arith.constant 0 : index
    %104 = vector.load %arg6[%c1_48, %c0_49] : memref<3x256xf32, #tpu.memory_space<vmem>>, vector<1x256xf32>
    %105 = vector.broadcast %104 : vector<1x256xf32> to vector<8x256xf32>
    %106 = arith.mulf %103, %105 : vector<8x256xf32>
    %c1_50 = arith.constant 1 : index
    %c0_51 = arith.constant 0 : index
    %107 = vector.load %arg5[%c1_50, %c0_51] : memref<3x256xf32, #tpu.memory_space<vmem>>, vector<1x256xf32>
    %108 = vector.broadcast %107 : vector<1x256xf32> to vector<8x256xf32>
    %109 = arith.subf %108, %1 : vector<8x256xf32>
    %c1_52 = arith.constant 1 : index
    %c0_53 = arith.constant 0 : index
    %110 = vector.load %arg7[%c1_52, %c0_53] : memref<3x256xf32, #tpu.memory_space<vmem>>, vector<1x256xf32>
    %111 = vector.broadcast %110 : vector<1x256xf32> to vector<8x256xf32>
    %112 = arith.mulf %109, %111 : vector<8x256xf32>
    %113 = arith.mulf %106, %106 : vector<8x256xf32>
    %114 = math.absf %106 : vector<8x256xf32>
    %cst_54 = arith.constant 0.327591091 : f32
    %115 = vector.broadcast %cst_54 : f32 to vector<8x256xf32>
    %116 = arith.mulf %115, %114 : vector<8x256xf32>
    %cst_55 = arith.constant 1.000000e+00 : f32
    %117 = vector.broadcast %cst_55 : f32 to vector<8x256xf32>
    %118 = arith.addf %117, %116 : vector<8x256xf32>
    %cst_56 = arith.constant 1.000000e+00 : f32
    %119 = vector.broadcast %cst_56 : f32 to vector<8x256xf32>
    %120 = arith.divf %119, %118 : vector<8x256xf32>
    %cst_57 = arith.constant 1.06140542 : f32
    %121 = vector.broadcast %cst_57 : f32 to vector<8x256xf32>
    %122 = arith.mulf %120, %121 : vector<8x256xf32>
    %cst_58 = arith.constant -1.45315206 : f32
    %123 = vector.broadcast %cst_58 : f32 to vector<8x256xf32>
    %124 = arith.addf %123, %122 : vector<8x256xf32>
    %125 = arith.mulf %120, %124 : vector<8x256xf32>
    %cst_59 = arith.constant 1.42141378 : f32
    %126 = vector.broadcast %cst_59 : f32 to vector<8x256xf32>
    %127 = arith.addf %126, %125 : vector<8x256xf32>
    %128 = arith.mulf %120, %127 : vector<8x256xf32>
    %cst_60 = arith.constant -0.284496725 : f32
    %129 = vector.broadcast %cst_60 : f32 to vector<8x256xf32>
    %130 = arith.addf %129, %128 : vector<8x256xf32>
    %131 = arith.mulf %120, %130 : vector<8x256xf32>
    %cst_61 = arith.constant 0.254829586 : f32
    %132 = vector.broadcast %cst_61 : f32 to vector<8x256xf32>
    %133 = arith.addf %132, %131 : vector<8x256xf32>
    %134 = arith.mulf %120, %133 : vector<8x256xf32>
    %cst_62 = arith.constant 0.000000e+00 : f32
    %135 = vector.broadcast %cst_62 : f32 to vector<8x256xf32>
    %136 = arith.subf %135, %113 : vector<8x256xf32>
    %137 = math.exp %136 : vector<8x256xf32>
    %138 = arith.mulf %134, %137 : vector<8x256xf32>
    %cst_63 = arith.constant 0.000000e+00 : f32
    %139 = vector.broadcast %cst_63 : f32 to vector<8x256xf32>
    %140 = arith.cmpf oge, %106, %139 : vector<8x256xf32>
    %cst_64 = arith.constant 2.000000e+00 : f32
    %141 = vector.broadcast %cst_64 : f32 to vector<8x256xf32>
    %142 = arith.subf %141, %138 : vector<8x256xf32>
    %143 = arith.select %140, %138, %142 : vector<8x256xi1>, vector<8x256xf32>
    %cst_65 = arith.constant 2.000000e-15 : f32
    %144 = vector.broadcast %cst_65 : f32 to vector<8x256xf32>
    %145 = arith.maximumf %143, %144 : vector<8x256xf32>
    %146 = math.log %145 : vector<8x256xf32>
    %cst_66 = arith.constant dense<0.000000e+00> : vector<8xf32>
    %147 = vector.multi_reduction <add>, %146, %cst_66 [1] : vector<8x256xf32> to vector<8xf32>
    %148 = vector.shape_cast %147 : vector<8xf32> to vector<8x1xf32>
    %cst_67 = arith.constant -177.445679 : f32
    %149 = vector.broadcast %cst_67 : f32 to vector<8x1xf32>
    %150 = arith.addf %148, %149 : vector<8x1xf32>
    %cst_68 = arith.constant dense<0.000000e+00> : vector<8xf32>
    %151 = vector.multi_reduction <add>, %113, %cst_68 [1] : vector<8x256xf32> to vector<8xf32>
    %152 = vector.shape_cast %151 : vector<8xf32> to vector<8x1xf32>
    %153 = arith.mulf %112, %112 : vector<8x256xf32>
    %154 = math.absf %112 : vector<8x256xf32>
    %cst_69 = arith.constant 0.327591091 : f32
    %155 = vector.broadcast %cst_69 : f32 to vector<8x256xf32>
    %156 = arith.mulf %155, %154 : vector<8x256xf32>
    %cst_70 = arith.constant 1.000000e+00 : f32
    %157 = vector.broadcast %cst_70 : f32 to vector<8x256xf32>
    %158 = arith.addf %157, %156 : vector<8x256xf32>
    %cst_71 = arith.constant 1.000000e+00 : f32
    %159 = vector.broadcast %cst_71 : f32 to vector<8x256xf32>
    %160 = arith.divf %159, %158 : vector<8x256xf32>
    %cst_72 = arith.constant 1.06140542 : f32
    %161 = vector.broadcast %cst_72 : f32 to vector<8x256xf32>
    %162 = arith.mulf %160, %161 : vector<8x256xf32>
    %cst_73 = arith.constant -1.45315206 : f32
    %163 = vector.broadcast %cst_73 : f32 to vector<8x256xf32>
    %164 = arith.addf %163, %162 : vector<8x256xf32>
    %165 = arith.mulf %160, %164 : vector<8x256xf32>
    %cst_74 = arith.constant 1.42141378 : f32
    %166 = vector.broadcast %cst_74 : f32 to vector<8x256xf32>
    %167 = arith.addf %166, %165 : vector<8x256xf32>
    %168 = arith.mulf %160, %167 : vector<8x256xf32>
    %cst_75 = arith.constant -0.284496725 : f32
    %169 = vector.broadcast %cst_75 : f32 to vector<8x256xf32>
    %170 = arith.addf %169, %168 : vector<8x256xf32>
    %171 = arith.mulf %160, %170 : vector<8x256xf32>
    %cst_76 = arith.constant 0.254829586 : f32
    %172 = vector.broadcast %cst_76 : f32 to vector<8x256xf32>
    %173 = arith.addf %172, %171 : vector<8x256xf32>
    %174 = arith.mulf %160, %173 : vector<8x256xf32>
    %cst_77 = arith.constant 0.000000e+00 : f32
    %175 = vector.broadcast %cst_77 : f32 to vector<8x256xf32>
    %176 = arith.subf %175, %153 : vector<8x256xf32>
    %177 = math.exp %176 : vector<8x256xf32>
    %178 = arith.mulf %174, %177 : vector<8x256xf32>
    %cst_78 = arith.constant 0.000000e+00 : f32
    %179 = vector.broadcast %cst_78 : f32 to vector<8x256xf32>
    %180 = arith.cmpf oge, %112, %179 : vector<8x256xf32>
    %cst_79 = arith.constant 2.000000e+00 : f32
    %181 = vector.broadcast %cst_79 : f32 to vector<8x256xf32>
    %182 = arith.subf %181, %178 : vector<8x256xf32>
    %183 = arith.select %180, %178, %182 : vector<8x256xi1>, vector<8x256xf32>
    %cst_80 = arith.constant 2.000000e-15 : f32
    %184 = vector.broadcast %cst_80 : f32 to vector<8x256xf32>
    %185 = arith.maximumf %183, %184 : vector<8x256xf32>
    %186 = math.log %185 : vector<8x256xf32>
    %cst_81 = arith.constant dense<0.000000e+00> : vector<8xf32>
    %187 = vector.multi_reduction <add>, %186, %cst_81 [1] : vector<8x256xf32> to vector<8xf32>
    %188 = vector.shape_cast %187 : vector<8xf32> to vector<8x1xf32>
    %cst_82 = arith.constant -177.445679 : f32
    %189 = vector.broadcast %cst_82 : f32 to vector<8x1xf32>
    %190 = arith.addf %188, %189 : vector<8x1xf32>
    %cst_83 = arith.constant dense<0.000000e+00> : vector<8xf32>
    %191 = vector.multi_reduction <add>, %153, %cst_83 [1] : vector<8x256xf32> to vector<8xf32>
    %192 = vector.shape_cast %191 : vector<8xf32> to vector<8x1xf32>
    %c0_84 = arith.constant 0 : index
    %c1_85 = arith.constant 1 : index
    %193 = vector.load %arg8[%c0_84, %c1_85] : memref<8x3xf32, #tpu.memory_space<vmem>>, vector<8x1xf32>
    tpu.vector_store %arg8[%c0_84, %c1_85], %150 {strides = array<i32>} : memref<8x3xf32, #tpu.memory_space<vmem>>, vector<8x1xf32>,
    %c0_86 = arith.constant 0 : index
    %c1_87 = arith.constant 1 : index
    %194 = vector.load %arg9[%c0_86, %c1_87] : memref<8x3xf32, #tpu.memory_space<vmem>>, vector<8x1xf32>
    tpu.vector_store %arg9[%c0_86, %c1_87], %190 {strides = array<i32>} : memref<8x3xf32, #tpu.memory_space<vmem>>, vector<8x1xf32>,
    %c1_88 = arith.constant 1 : index
    %195 = memref.load %arg1[%c1_88] : memref<3xf32, #tpu.memory_space<smem>>
    %196 = arith.addf %152, %192 : vector<8x1xf32>
    %197 = vector.broadcast %195 : f32 to vector<8x1xf32>
    %198 = arith.subf %197, %196 : vector<8x1xf32>
    %c0_89 = arith.constant 0 : index
    %c1_90 = arith.constant 1 : index
    %199 = vector.load %arg10[%c0_89, %c1_90] : memref<8x3xf32, #tpu.memory_space<vmem>>, vector<8x1xf32>
    tpu.vector_store %arg10[%c0_89, %c1_90], %198 {strides = array<i32>} : memref<8x3xf32, #tpu.memory_space<vmem>>, vector<8x1xf32>,
    %c2 = arith.constant 2 : index
    %c0_91 = arith.constant 0 : index
    %200 = vector.load %arg4[%c2, %c0_91] : memref<3x256xf32, #tpu.memory_space<vmem>>, vector<1x256xf32>
    %201 = vector.broadcast %200 : vector<1x256xf32> to vector<8x256xf32>
    %202 = arith.subf %201, %0 : vector<8x256xf32>
    %c2_92 = arith.constant 2 : index
    %c0_93 = arith.constant 0 : index
    %203 = vector.load %arg6[%c2_92, %c0_93] : memref<3x256xf32, #tpu.memory_space<vmem>>, vector<1x256xf32>
    %204 = vector.broadcast %203 : vector<1x256xf32> to vector<8x256xf32>
    %205 = arith.mulf %202, %204 : vector<8x256xf32>
    %c2_94 = arith.constant 2 : index
    %c0_95 = arith.constant 0 : index
    %206 = vector.load %arg5[%c2_94, %c0_95] : memref<3x256xf32, #tpu.memory_space<vmem>>, vector<1x256xf32>
    %207 = vector.broadcast %206 : vector<1x256xf32> to vector<8x256xf32>
    %208 = arith.subf %207, %1 : vector<8x256xf32>
    %c2_96 = arith.constant 2 : index
    %c0_97 = arith.constant 0 : index
    %209 = vector.load %arg7[%c2_96, %c0_97] : memref<3x256xf32, #tpu.memory_space<vmem>>, vector<1x256xf32>
    %210 = vector.broadcast %209 : vector<1x256xf32> to vector<8x256xf32>
    %211 = arith.mulf %208, %210 : vector<8x256xf32>
    %212 = arith.mulf %205, %205 : vector<8x256xf32>
    %213 = math.absf %205 : vector<8x256xf32>
    %cst_98 = arith.constant 0.327591091 : f32
    %214 = vector.broadcast %cst_98 : f32 to vector<8x256xf32>
    %215 = arith.mulf %214, %213 : vector<8x256xf32>
    %cst_99 = arith.constant 1.000000e+00 : f32
    %216 = vector.broadcast %cst_99 : f32 to vector<8x256xf32>
    %217 = arith.addf %216, %215 : vector<8x256xf32>
    %cst_100 = arith.constant 1.000000e+00 : f32
    %218 = vector.broadcast %cst_100 : f32 to vector<8x256xf32>
    %219 = arith.divf %218, %217 : vector<8x256xf32>
    %cst_101 = arith.constant 1.06140542 : f32
    %220 = vector.broadcast %cst_101 : f32 to vector<8x256xf32>
    %221 = arith.mulf %219, %220 : vector<8x256xf32>
    %cst_102 = arith.constant -1.45315206 : f32
    %222 = vector.broadcast %cst_102 : f32 to vector<8x256xf32>
    %223 = arith.addf %222, %221 : vector<8x256xf32>
    %224 = arith.mulf %219, %223 : vector<8x256xf32>
    %cst_103 = arith.constant 1.42141378 : f32
    %225 = vector.broadcast %cst_103 : f32 to vector<8x256xf32>
    %226 = arith.addf %225, %224 : vector<8x256xf32>
    %227 = arith.mulf %219, %226 : vector<8x256xf32>
    %cst_104 = arith.constant -0.284496725 : f32
    %228 = vector.broadcast %cst_104 : f32 to vector<8x256xf32>
    %229 = arith.addf %228, %227 : vector<8x256xf32>
    %230 = arith.mulf %219, %229 : vector<8x256xf32>
    %cst_105 = arith.constant 0.254829586 : f32
    %231 = vector.broadcast %cst_105 : f32 to vector<8x256xf32>
    %232 = arith.addf %231, %230 : vector<8x256xf32>
    %233 = arith.mulf %219, %232 : vector<8x256xf32>
    %cst_106 = arith.constant 0.000000e+00 : f32
    %234 = vector.broadcast %cst_106 : f32 to vector<8x256xf32>
    %235 = arith.subf %234, %212 : vector<8x256xf32>
    %236 = math.exp %235 : vector<8x256xf32>
    %237 = arith.mulf %233, %236 : vector<8x256xf32>
    %cst_107 = arith.constant 0.000000e+00 : f32
    %238 = vector.broadcast %cst_107 : f32 to vector<8x256xf32>
    %239 = arith.cmpf oge, %205, %238 : vector<8x256xf32>
    %cst_108 = arith.constant 2.000000e+00 : f32
    %240 = vector.broadcast %cst_108 : f32 to vector<8x256xf32>
    %241 = arith.subf %240, %237 : vector<8x256xf32>
    %242 = arith.select %239, %237, %241 : vector<8x256xi1>, vector<8x256xf32>
    %cst_109 = arith.constant 2.000000e-15 : f32
    %243 = vector.broadcast %cst_109 : f32 to vector<8x256xf32>
    %244 = arith.maximumf %242, %243 : vector<8x256xf32>
    %245 = math.log %244 : vector<8x256xf32>
    %cst_110 = arith.constant dense<0.000000e+00> : vector<8xf32>
    %246 = vector.multi_reduction <add>, %245, %cst_110 [1] : vector<8x256xf32> to vector<8xf32>
    %247 = vector.shape_cast %246 : vector<8xf32> to vector<8x1xf32>
    %cst_111 = arith.constant -177.445679 : f32
    %248 = vector.broadcast %cst_111 : f32 to vector<8x1xf32>
    %249 = arith.addf %247, %248 : vector<8x1xf32>
    %cst_112 = arith.constant dense<0.000000e+00> : vector<8xf32>
    %250 = vector.multi_reduction <add>, %212, %cst_112 [1] : vector<8x256xf32> to vector<8xf32>
    %251 = vector.shape_cast %250 : vector<8xf32> to vector<8x1xf32>
    %252 = arith.mulf %211, %211 : vector<8x256xf32>
    %253 = math.absf %211 : vector<8x256xf32>
    %cst_113 = arith.constant 0.327591091 : f32
    %254 = vector.broadcast %cst_113 : f32 to vector<8x256xf32>
    %255 = arith.mulf %254, %253 : vector<8x256xf32>
    %cst_114 = arith.constant 1.000000e+00 : f32
    %256 = vector.broadcast %cst_114 : f32 to vector<8x256xf32>
    %257 = arith.addf %256, %255 : vector<8x256xf32>
    %cst_115 = arith.constant 1.000000e+00 : f32
    %258 = vector.broadcast %cst_115 : f32 to vector<8x256xf32>
    %259 = arith.divf %258, %257 : vector<8x256xf32>
    %cst_116 = arith.constant 1.06140542 : f32
    %260 = vector.broadcast %cst_116 : f32 to vector<8x256xf32>
    %261 = arith.mulf %259, %260 : vector<8x256xf32>
    %cst_117 = arith.constant -1.45315206 : f32
    %262 = vector.broadcast %cst_117 : f32 to vector<8x256xf32>
    %263 = arith.addf %262, %261 : vector<8x256xf32>
    %264 = arith.mulf %259, %263 : vector<8x256xf32>
    %cst_118 = arith.constant 1.42141378 : f32
    %265 = vector.broadcast %cst_118 : f32 to vector<8x256xf32>
    %266 = arith.addf %265, %264 : vector<8x256xf32>
    %267 = arith.mulf %259, %266 : vector<8x256xf32>
    %cst_119 = arith.constant -0.284496725 : f32
    %268 = vector.broadcast %cst_119 : f32 to vector<8x256xf32>
    %269 = arith.addf %268, %267 : vector<8x256xf32>
    %270 = arith.mulf %259, %269 : vector<8x256xf32>
    %cst_120 = arith.constant 0.254829586 : f32
    %271 = vector.broadcast %cst_120 : f32 to vector<8x256xf32>
    %272 = arith.addf %271, %270 : vector<8x256xf32>
    %273 = arith.mulf %259, %272 : vector<8x256xf32>
    %cst_121 = arith.constant 0.000000e+00 : f32
    %274 = vector.broadcast %cst_121 : f32 to vector<8x256xf32>
    %275 = arith.subf %274, %252 : vector<8x256xf32>
    %276 = math.exp %275 : vector<8x256xf32>
    %277 = arith.mulf %273, %276 : vector<8x256xf32>
    %cst_122 = arith.constant 0.000000e+00 : f32
    %278 = vector.broadcast %cst_122 : f32 to vector<8x256xf32>
    %279 = arith.cmpf oge, %211, %278 : vector<8x256xf32>
    %cst_123 = arith.constant 2.000000e+00 : f32
    %280 = vector.broadcast %cst_123 : f32 to vector<8x256xf32>
    %281 = arith.subf %280, %277 : vector<8x256xf32>
    %282 = arith.select %279, %277, %281 : vector<8x256xi1>, vector<8x256xf32>
    %cst_124 = arith.constant 2.000000e-15 : f32
    %283 = vector.broadcast %cst_124 : f32 to vector<8x256xf32>
    %284 = arith.maximumf %282, %283 : vector<8x256xf32>
    %285 = math.log %284 : vector<8x256xf32>
    %cst_125 = arith.constant dense<0.000000e+00> : vector<8xf32>
    %286 = vector.multi_reduction <add>, %285, %cst_125 [1] : vector<8x256xf32> to vector<8xf32>
    %287 = vector.shape_cast %286 : vector<8xf32> to vector<8x1xf32>
    %cst_126 = arith.constant -177.445679 : f32
    %288 = vector.broadcast %cst_126 : f32 to vector<8x1xf32>
    %289 = arith.addf %287, %288 : vector<8x1xf32>
    %cst_127 = arith.constant dense<0.000000e+00> : vector<8xf32>
    %290 = vector.multi_reduction <add>, %252, %cst_127 [1] : vector<8x256xf32> to vector<8xf32>
    %291 = vector.shape_cast %290 : vector<8xf32> to vector<8x1xf32>
    %c0_128 = arith.constant 0 : index
    %c2_129 = arith.constant 2 : index
    %292 = vector.load %arg8[%c0_128, %c2_129] : memref<8x3xf32, #tpu.memory_space<vmem>>, vector<8x1xf32>
    tpu.vector_store %arg8[%c0_128, %c2_129], %249 {strides = array<i32>} : memref<8x3xf32, #tpu.memory_space<vmem>>, vector<8x1xf32>,
    %c0_130 = arith.constant 0 : index
    %c2_131 = arith.constant 2 : index
    %293 = vector.load %arg9[%c0_130, %c2_131] : memref<8x3xf32, #tpu.memory_space<vmem>>, vector<8x1xf32>
    tpu.vector_store %arg9[%c0_130, %c2_131], %289 {strides = array<i32>} : memref<8x3xf32, #tpu.memory_space<vmem>>, vector<8x1xf32>,
    %c2_132 = arith.constant 2 : index
    %294 = memref.load %arg1[%c2_132] : memref<3xf32, #tpu.memory_space<smem>>
    %295 = arith.addf %251, %291 : vector<8x1xf32>
    %296 = vector.broadcast %294 : f32 to vector<8x1xf32>
    %297 = arith.subf %296, %295 : vector<8x1xf32>
    %c0_133 = arith.constant 0 : index
    %c2_134 = arith.constant 2 : index
    %298 = vector.load %arg10[%c0_133, %c2_134] : memref<8x3xf32, #tpu.memory_space<vmem>>, vector<8x1xf32>
    tpu.vector_store %arg10[%c0_133, %c2_134], %297 {strides = array<i32>} : memref<8x3xf32, #tpu.memory_space<vmem>>, vector<8x1xf32>,
    return
  }
  func.func @transform_0(%arg0: i32, %arg1: memref<3xf32, #tpu.memory_space<smem>>) -> (i32, i32) {
    %c0_i32 = arith.constant 0 : i32
    %c0_i32_0 = arith.constant 0 : i32
    return %arg0, %c0_i32 : i32, i32
  }
  func.func @transform_1(%arg0: i32, %arg1: memref<3xf32, #tpu.memory_space<smem>>) -> (i32, i32) {
    %c0_i32 = arith.constant 0 : i32
    %c0_i32_0 = arith.constant 0 : i32
    return %arg0, %c0_i32 : i32, i32
  }
  func.func @transform_2(%arg0: i32, %arg1: memref<3xf32, #tpu.memory_space<smem>>) -> (i32, i32) {
    %c0_i32 = arith.constant 0 : i32
    %c0_i32_0 = arith.constant 0 : i32
    %c0_i32_1 = arith.constant 0 : i32
    return %c0_i32, %c0_i32_0 : i32, i32
  }
  func.func @transform_3(%arg0: i32, %arg1: memref<3xf32, #tpu.memory_space<smem>>) -> (i32, i32) {
    %c0_i32 = arith.constant 0 : i32
    %c0_i32_0 = arith.constant 0 : i32
    %c0_i32_1 = arith.constant 0 : i32
    return %c0_i32, %c0_i32_0 : i32, i32
  }
  func.func @transform_4(%arg0: i32, %arg1: memref<3xf32, #tpu.memory_space<smem>>) -> (i32, i32) {
    %c0_i32 = arith.constant 0 : i32
    %c0_i32_0 = arith.constant 0 : i32
    %c0_i32_1 = arith.constant 0 : i32
    return %c0_i32, %c0_i32_0 : i32, i32
  }
  func.func @transform_5(%arg0: i32, %arg1: memref<3xf32, #tpu.memory_space<smem>>) -> (i32, i32) {
    %c0_i32 = arith.constant 0 : i32
    %c0_i32_0 = arith.constant 0 : i32
    %c0_i32_1 = arith.constant 0 : i32
    return %c0_i32, %c0_i32_0 : i32, i32
  }
  func.func @transform_6(%arg0: i32, %arg1: memref<3xf32, #tpu.memory_space<smem>>) -> (i32, i32) {
    %c0_i32 = arith.constant 0 : i32
    %c0_i32_0 = arith.constant 0 : i32
    return %arg0, %c0_i32 : i32, i32
  }
  func.func @transform_7(%arg0: i32, %arg1: memref<3xf32, #tpu.memory_space<smem>>) -> (i32, i32) {
    %c0_i32 = arith.constant 0 : i32
    %c0_i32_0 = arith.constant 0 : i32
    return %arg0, %c0_i32 : i32, i32
  }
  func.func @transform_8(%arg0: i32, %arg1: memref<3xf32, #tpu.memory_space<smem>>) -> (i32, i32) {
    %c0_i32 = arith.constant 0 : i32
    %c0_i32_0 = arith.constant 0 : i32
    return %arg0, %c0_i32 : i32, i32
  }
}

</mosaic_0001>

<llo_original>
// kernel: copula_loss.3
$region0: #{copula_loss.3}
  #allocation0 [shape = 'u32[]', space=smem, size = 0x4, offset = 0x4, fixed_abs, tag = 'smem constant byte address 0x4 - core index']
  #allocation1 [shape = 'u32[144,128]{1,0:T(1,128)}', space=vmem, size = 0x12000, scoped, tag = 'internal scratch']
  #allocation2 [shape = 's32[1]{0}', space=sflag, size = 0x4, scoped, tag = 'scoped memory for copula_loss.3']
  #allocation3 [shape = 'u8[512]{0}', space=smem, size = 0x200, scoped, tag = 'prefetched SMEM operand 0']
  %s0 = inlined_call_operand.vmem [shape: f32[2], index: 0, kind: input, shape index: {}]
  %s1 = inlined_call_operand.vmem [shape: f32[8,3], index: 1, kind: input, shape index: {}]
  %s2 = inlined_call_operand.vmem [shape: f32[8,3], index: 2, kind: input, shape index: {}]
  %s3 = inlined_call_operand.vmem [shape: f32[8,3], index: 3, kind: input, shape index: {}]
  %s4 = inlined_call_operand.vmem [shape: f32[1,3], index: 4, kind: input, shape index: {}]
  %s5 = inlined_call_operand.vmem [shape: f32[1,3], index: 5, kind: input, shape index: {}]
  %s6 = inlined_call_operand.vmem [shape: f32[8,1], index: 6, kind: output, shape index: {}]
  %s7 = sld [smem:[#allocation0]]
  $region30: #{copula_loss.3} parent=0
    _
  %s9 = ssub.s32 1, %s7
  %s10 = scalar_select 0, %s9, %s7
  %s11 = sshll.u32 %s0, 4
  %s12 = int_to_ptr.vmem [resolvable:$true] %s11
  %14 = dma.vmem_to_smem %s12, 16, [#allocation3], [#allocation2]
  %15 = dma.done [#allocation2], 16
  %16 = sfence
  // Predicated region
  $region2: #{copula_loss.3} parent=0 // pred_check
    _
  $region3: #{copula_loss.3} parent=0 // pred_check_branch
    %18 = sbr.rel (0) target = $region5
  $region4: #{copula_loss.3} parent=0 // pred_region
    _
  $region5: #{copula_loss.3} parent=0 // pred_fallthru
    _
  // Predicated region
  $region6: #{copula_loss.3} parent=0 // pred_check
    _
  $region7: #{copula_loss.3} parent=0 // pred_check_branch
    %20 = sbr.rel (0) target = $region9
  $region8: #{copula_loss.3} parent=0 // pred_region
    _
  $region9: #{copula_loss.3} parent=0 // pred_fallthru
    _
  // Predicated region
  $region10: #{copula_loss.3} parent=0 // pred_check
    _
  $region11: #{copula_loss.3} parent=0 // pred_check_branch
    %22 = sbr.rel (0) target = $region13
  $region12: #{copula_loss.3} parent=0 // pred_region
    _
  $region13: #{copula_loss.3} parent=0 // pred_fallthru
    _
  // Predicated region
  $region14: #{copula_loss.3} parent=0 // pred_check
    _
  $region15: #{copula_loss.3} parent=0 // pred_check_branch
    %24 = sbr.rel (0) target = $region17
  $region16: #{copula_loss.3} parent=0 // pred_region
    _
  $region17: #{copula_loss.3} parent=0 // pred_fallthru
    _
  // Predicated region
  $region18: #{copula_loss.3} parent=0 // pred_check
    _
  $region19: #{copula_loss.3} parent=0 // pred_check_branch
    %26 = sbr.rel (0) target = $region21
  $region20: #{copula_loss.3} parent=0 // pred_region
    _
  $region21: #{copula_loss.3} parent=0 // pred_fallthru
    _
  %s27 = sld [smem:[#allocation3]]
  %s28 = sld [smem:[#allocation3 + $0x1]]
  %v29 = vld [vmem:[%s1] sm:$0xff]
  %v30 = vld [vmem:[%s4] sm:$0x1]
  %v32 = vlaneseq
  %v33 = vshrl.u32 %v32, 7
  %v34 = vsub.s32 0, %v33
  %v35 = vrot.slane %v30, %v34
  %v37 = vmin.f32 %v29, %v35
  %v38 = vld [vmem:[%s2] sm:$0xff]
  %v39 = vld [vmem:[%s5] sm:$0x1]
  %v41 = vlaneseq
  %v42 = vshrl.u32 %v41, 7
  %v43 = vsub.s32 0, %v42
  %v44 = vrot.slane %v39, %v43
  %v46 = vmin.f32 %v38, %v44
  %v47 = vsub.f32 0.0, %v37
  %v48 = vlog2.pop %v47
  %v49 = vmul.f32 %v48, 0.6931472
  %v50 = vstv %s27
  %v51 = vmul.f32 %v50, %v49
  %v52 = vsub.f32 0.0, %v46
  %v53 = vlog2.pop %v52
  %v54 = vmul.f32 %v53, 0.6931472
  %v55 = vmul.f32 %v50, %v54
  %v56 = vmax.f32 %v51, %v55
  %v57 = vsub.f32 %v51, %v55
  %v58 = vand.u32 2147483647, %v57
  %v59 = vsub.f32 0.0, %v58
  %v60 = vmul.f32 %v59, 1.442695
  %v61 = vpow.pop %v60
  %v62 = vadd.f32 %v61, 1.0
  %v63 = vlog2.pop %v62
  %v64 = vmul.f32 %v63, 0.6931472
  %v65 = vadd.f32 %v56, %v64
  %v66 = vstv %s28
  %v67 = vmul.f32 %v66, %v65
  %v68 = vmul.f32 %v67, 1.442695
  %v69 = vpow.pop %v68
  %v70 = vsub.f32 0.0, %v69
  %v71 = vld [vmem:[%s3] sm:$0xff]
  %v72 = vadd.f32 %v70, %v71
  %vm73 = vcmask 23552
  %v74 = vsel %vm73, %v72, -inf
  %75 = vmax.xlane.f32.xlu0 %v74
  %v76 = vpop.xlane.xlu0 %75
  %v77 = vsub.f32 %v72, %v76
  %v78 = vmul.f32 %v77, 1.442695
  %v79 = vpow.pop %v78
  %v80 = vsel %vm73, %v79, 0.0
  %81 = vadd.xlane.f32.xlu0 %v80
  %v82 = vpop.xlane.xlu0 %81
  %v83 = vlog2.pop %v82
  %v84 = vmul.f32 %v83, 0.6931472
  %v85 = vadd.f32 %v76, %v84
  %vm86 = vcmask 7168
  %87 = vst.msk [vmem:[%s6] sm:$0xff] %vm86, %v85
  // Predicated region
  $region22: #{copula_loss.3} parent=0 // pred_check
    _
  $region23: #{copula_loss.3} parent=0 // pred_check_branch
    %89 = sbr.rel (0) target = $region25
  $region24: #{copula_loss.3} parent=0 // pred_region
    _
  $region25: #{copula_loss.3} parent=0 // pred_fallthru
    _
  // Predicated region
  $region26: #{copula_loss.3} parent=0 // pred_check
    _
  $region27: #{copula_loss.3} parent=0 // pred_check_branch
    %91 = sbr.rel (0) target = $region29
  $region28: #{copula_loss.3} parent=0 // pred_region
    _
  $region29: #{copula_loss.3} parent=0 // pred_fallthru
    _

// kernel: copula_loss.2
$region0: #{copula_loss.2}
  #allocation0 [shape = 'u32[]', space=smem, size = 0x4, offset = 0x4, fixed_abs, tag = 'smem constant byte address 0x4 - core index']
  #allocation1 [shape = 'u32[144,128]{1,0:T(1,128)}', space=vmem, size = 0x12000, scoped, tag = 'internal scratch']
  #allocation2 [shape = 's32[1]{0}', space=sflag, size = 0x4, scoped, tag = 'scoped memory for copula_loss.2']
  #allocation3 [shape = 'u8[512]{0}', space=smem, size = 0x200, scoped, tag = 'prefetched SMEM operand 0']
  %s0 = inlined_call_operand.vmem [shape: f32[3], index: 0, kind: input, shape index: {}]
  %s1 = inlined_call_operand.vmem [shape: f32[8,256], index: 1, kind: input, shape index: {}]
  %s2 = inlined_call_operand.vmem [shape: f32[8,256], index: 2, kind: input, shape index: {}]
  %s3 = inlined_call_operand.vmem [shape: f32[3,256], index: 3, kind: input, shape index: {}]
  %s4 = inlined_call_operand.vmem [shape: f32[3,256], index: 4, kind: input, shape index: {}]
  %s5 = inlined_call_operand.vmem [shape: f32[3,256], index: 5, kind: input, shape index: {}]
  %s6 = inlined_call_operand.vmem [shape: f32[3,256], index: 6, kind: input, shape index: {}]
  %s7 = inlined_call_operand.vmem [shape: f32[8,3], index: 7, kind: output, shape index: {0}]
  %s8 = inlined_call_operand.vmem [shape: f32[8,3], index: 8, kind: output, shape index: {1}]
  %s9 = inlined_call_operand.vmem [shape: f32[8,3], index: 9, kind: output, shape index: {2}]
  %10 = xla_tuple %s7, %s8, %s9
  %s11 = sld [smem:[#allocation0]]
  $region50: #{copula_loss.2} parent=0
    _
  %s13 = ssub.s32 1, %s11
  %s14 = scalar_select 0, %s13, %s11
  %s15 = sshll.u32 %s0, 4
  %s16 = int_to_ptr.vmem [resolvable:$true] %s15
  %18 = dma.vmem_to_smem %s16, 16, [#allocation3], [#allocation2]
  %19 = dma.done [#allocation2], 16
  %20 = sfence
  // Predicated region
  $region2: #{copula_loss.2} parent=0 // pred_check
    _
  $region3: #{copula_loss.2} parent=0 // pred_check_branch
    %22 = sbr.rel (0) target = $region5
  $region4: #{copula_loss.2} parent=0 // pred_region
    _
  $region5: #{copula_loss.2} parent=0 // pred_fallthru
    _
  // Predicated region
  $region6: #{copula_loss.2} parent=0 // pred_check
    _
  $region7: #{copula_loss.2} parent=0 // pred_check_branch
    %24 = sbr.rel (0) target = $region9
  $region8: #{copula_loss.2} parent=0 // pred_region
    _
  $region9: #{copula_loss.2} parent=0 // pred_fallthru
    _
  // Predicated region
  $region10: #{copula_loss.2} parent=0 // pred_check
    _
  $region11: #{copula_loss.2} parent=0 // pred_check_branch
    %26 = sbr.rel (0) target = $region13
  $region12: #{copula_loss.2} parent=0 // pred_region
    _
  $region13: #{copula_loss.2} parent=0 // pred_fallthru
    _
  // Predicated region
  $region14: #{copula_loss.2} parent=0 // pred_check
    _
  $region15: #{copula_loss.2} parent=0 // pred_check_branch
    %28 = sbr.rel (0) target = $region17
  $region16: #{copula_loss.2} parent=0 // pred_region
    _
  $region17: #{copula_loss.2} parent=0 // pred_fallthru
    _
  // Predicated region
  $region18: #{copula_loss.2} parent=0 // pred_check
    _
  $region19: #{copula_loss.2} parent=0 // pred_check_branch
    %30 = sbr.rel (0) target = $region21
  $region20: #{copula_loss.2} parent=0 // pred_region
    _
  $region21: #{copula_loss.2} parent=0 // pred_fallthru
    _
  // Predicated region
  $region22: #{copula_loss.2} parent=0 // pred_check
    _
  $region23: #{copula_loss.2} parent=0 // pred_check_branch
    %32 = sbr.rel (0) target = $region25
  $region24: #{copula_loss.2} parent=0 // pred_region
    _
  $region25: #{copula_loss.2} parent=0 // pred_fallthru
    _
  %v33 = vld [vmem:[%s1] sm:$0xff]
  %v34 = vld [vmem:[%s1 + $0x8] sm:$0xff]
  %v35 = vld [vmem:[%s2] sm:$0xff]
  %v36 = vld [vmem:[%s2 + $0x8] sm:$0xff]
  %v37 = vld [vmem:[%s3] ss:$4 sm:$0x3]
  %v39 = vlaneseq
  %v40 = vshrl.u32 %v39, 7
  %v41 = vsub.s32 0, %v40
  %v42 = vrot.slane %v37, %v41
  %v43 = vlaneseq
  %v44 = vshrl.u32 %v43, 7
  %v45 = vsub.s32 1, %v44
  %v46 = vrot.slane %v37, %v45
  %v49 = vsub.f32 %v42, %v33
  %v50 = vsub.f32 %v46, %v34
  %v51 = vld [vmem:[%s5] ss:$4 sm:$0x3]
  %v53 = vlaneseq
  %v54 = vshrl.u32 %v53, 7
  %v55 = vsub.s32 0, %v54
  %v56 = vrot.slane %v51, %v55
  %v57 = vlaneseq
  %v58 = vshrl.u32 %v57, 7
  %v59 = vsub.s32 1, %v58
  %v60 = vrot.slane %v51, %v59
  %v63 = vmul.f32 %v49, %v56
  %v64 = vmul.f32 %v50, %v60
  %v65 = vld [vmem:[%s4] ss:$4 sm:$0x3]
  %v67 = vlaneseq
  %v68 = vshrl.u32 %v67, 7
  %v69 = vsub.s32 0, %v68
  %v70 = vrot.slane %v65, %v69
  %v71 = vlaneseq
  %v72 = vshrl.u32 %v71, 7
  %v73 = vsub.s32 1, %v72
  %v74 = vrot.slane %v65, %v73
  %v77 = vsub.f32 %v70, %v35
  %v78 = vsub.f32 %v74, %v36
  %v79 = vld [vmem:[%s6] ss:$4 sm:$0x3]
  %v81 = vlaneseq
  %v82 = vshrl.u32 %v81, 7
  %v83 = vsub.s32 0, %v82
  %v84 = vrot.slane %v79, %v83
  %v85 = vlaneseq
  %v86 = vshrl.u32 %v85, 7
  %v87 = vsub.s32 1, %v86
  %v88 = vrot.slane %v79, %v87
  %v91 = vmul.f32 %v77, %v84
  %v92 = vmul.f32 %v78, %v88
  %v93 = vmul.f32 %v63, %v63
  %v94 = vmul.f32 %v64, %v64
  %v95 = vand.u32 2147483647, %v63
  %v96 = vand.u32 2147483647, %v64
  %v97 = vmul.f32 %v95, 0.3275911
  %v98 = vmul.f32 %v96, 0.3275911
  %v99 = vadd.f32 %v97, 1.0
  %v100 = vadd.f32 %v98, 1.0
  %v101 = vrcp.pop %v99
  %v102 = vmul.f32 1.0, %v101
  %v103 = vrcp.pop %v100
  %v104 = vmul.f32 1.0, %v103
  %v105 = vmul.f32 %v102, 1.0614054
  %v106 = vmul.f32 %v104, 1.0614054
  %v107 = vadd.f32 %v105, -1.4531521
  %v108 = vadd.f32 %v106, -1.4531521
  %v109 = vmul.f32 %v102, %v107
  %v110 = vmul.f32 %v104, %v108
  %v111 = vadd.f32 %v109, 1.4214138
  %v112 = vadd.f32 %v110, 1.4214138
  %v113 = vmul.f32 %v102, %v111
  %v114 = vmul.f32 %v104, %v112
  %v115 = vadd.f32 %v113, -0.28449672
  %v116 = vadd.f32 %v114, -0.28449672
  %v117 = vmul.f32 %v102, %v115
  %v118 = vmul.f32 %v104, %v116
  %v119 = vadd.f32 %v117, 0.2548296
  %v120 = vadd.f32 %v118, 0.2548296
  %v121 = vmul.f32 %v102, %v119
  %v122 = vmul.f32 %v104, %v120
  %v123 = vsub.f32 0.0, %v93
  %v124 = vsub.f32 0.0, %v94
  %v125 = vmul.f32 %v123, 1.442695
  %v126 = vpow.pop %v125
  %v127 = vmul.f32 %v124, 1.442695
  %v128 = vpow.pop %v127
  %v129 = vmul.f32 %v121, %v126
  %v130 = vmul.f32 %v122, %v128
  %vm131 = vcmp.ge.f32.partialorder %v63, 0.0
  %vm132 = vcmp.ge.f32.partialorder %v64, 0.0
  %v133 = vsub.f32 2.0, %v129
  %v134 = vsub.f32 2.0, %v130
  %v135 = vsel %vm131, %v129, %v133
  %v136 = vsel %vm132, %v130, %v134
  %v137 = vmax.f32 %v135, 2e-15
  %v138 = vmax.f32 %v136, 2e-15
  %v139 = vlog2.pop %v137
  %v140 = vmul.f32 %v139, 0.6931472
  %v141 = vlog2.pop %v138
  %v142 = vmul.f32 %v141, 0.6931472
  %v143 = vadd.f32 %v140, %v142
  %144 = vadd.xlane.f32.xlu0 %v143
  %v145 = vpop.xlane.xlu0 %144
  %v146 = vadd.f32 %v145, -177.44568
  %v147 = vadd.f32 %v93, %v94
  %148 = vadd.xlane.f32.xlu0 %v147
  %v149 = vpop.xlane.xlu0 %148
  %v150 = vmul.f32 %v91, %v91
  %v151 = vmul.f32 %v92, %v92
  %v152 = vand.u32 2147483647, %v91
  %v153 = vand.u32 2147483647, %v92
  %v154 = vmul.f32 %v152, 0.3275911
  %v155 = vmul.f32 %v153, 0.3275911
  %v156 = vadd.f32 %v154, 1.0
  %v157 = vadd.f32 %v155, 1.0
  %v158 = vrcp.pop %v156
  %v159 = vmul.f32 1.0, %v158
  %v160 = vrcp.pop %v157
  %v161 = vmul.f32 1.0, %v160
  %v162 = vmul.f32 %v159, 1.0614054
  %v163 = vmul.f32 %v161, 1.0614054
  %v164 = vadd.f32 %v162, -1.4531521
  %v165 = vadd.f32 %v163, -1.4531521
  %v166 = vmul.f32 %v159, %v164
  %v167 = vmul.f32 %v161, %v165
  %v168 = vadd.f32 %v166, 1.4214138
  %v169 = vadd.f32 %v167, 1.4214138
  %v170 = vmul.f32 %v159, %v168
  %v171 = vmul.f32 %v161, %v169
  %v172 = vadd.f32 %v170, -0.28449672
  %v173 = vadd.f32 %v171, -0.28449672
  %v174 = vmul.f32 %v159, %v172
  %v175 = vmul.f32 %v161, %v173
  %v176 = vadd.f32 %v174, 0.2548296
  %v177 = vadd.f32 %v175, 0.2548296
  %v178 = vmul.f32 %v159, %v176
  %v179 = vmul.f32 %v161, %v177
  %v180 = vsub.f32 0.0, %v150
  %v181 = vsub.f32 0.0, %v151
  %v182 = vmul.f32 %v180, 1.442695
  %v183 = vpow.pop %v182
  %v184 = vmul.f32 %v181, 1.442695
  %v185 = vpow.pop %v184
  %v186 = vmul.f32 %v178, %v183
  %v187 = vmul.f32 %v179, %v185
  %vm188 = vcmp.ge.f32.partialorder %v91, 0.0
  %vm189 = vcmp.ge.f32.partialorder %v92, 0.0
  %v190 = vsub.f32 2.0, %v186
  %v191 = vsub.f32 2.0, %v187
  %v192 = vsel %vm188, %v186, %v190
  %v193 = vsel %vm189, %v187, %v191
  %v194 = vmax.f32 %v192, 2e-15
  %v195 = vmax.f32 %v193, 2e-15
  %v196 = vlog2.pop %v194
  %v197 = vmul.f32 %v196, 0.6931472
  %v198 = vlog2.pop %v195
  %v199 = vmul.f32 %v198, 0.6931472
  %v200 = vadd.f32 %v197, %v199
  %201 = vadd.xlane.f32.xlu0 %v200
  %v202 = vpop.xlane.xlu0 %201
  %v203 = vadd.f32 %v202, -177.44568
  %v204 = vadd.f32 %v150, %v151
  %205 = vadd.xlane.f32.xlu0 %v204
  %v206 = vpop.xlane.xlu0 %205
  %vm207 = vcmask 7168
  %208 = vst.msk [vmem:[%s7] sm:$0xff] %vm207, %v146
  %209 = vst.msk [vmem:[%s8] sm:$0xff] %vm207, %v203
  %s210 = sld [smem:[#allocation3]]
  %v211 = vadd.f32 %v149, %v206
  %v212 = vstv %s210
  %v213 = vsub.f32 %v212, %v211
  %214 = vst.msk [vmem:[%s9] sm:$0xff] %vm207, %v213
  %s215 = scalar_lea.vmem %s3, 1
  %v216 = vld [vmem:[%s215] ss:$4 sm:$0x3]
  %v218 = vlaneseq
  %v219 = vshrl.u32 %v218, 7
  %v220 = vsub.s32 0, %v219
  %v221 = vrot.slane %v216, %v220
  %v222 = vlaneseq
  %v223 = vshrl.u32 %v222, 7
  %v224 = vsub.s32 1, %v223
  %v225 = vrot.slane %v216, %v224
  %v228 = vsub.f32 %v221, %v33
  %v229 = vsub.f32 %v225, %v34
  %s230 = scalar_lea.vmem %s5, 1
  %v231 = vld [vmem:[%s230] ss:$4 sm:$0x3]
  %v233 = vlaneseq
  %v234 = vshrl.u32 %v233, 7
  %v235 = vsub.s32 0, %v234
  %v236 = vrot.slane %v231, %v235
  %v237 = vlaneseq
  %v238 = vshrl.u32 %v237, 7
  %v239 = vsub.s32 1, %v238
  %v240 = vrot.slane %v231, %v239
  %v243 = vmul.f32 %v228, %v236
  %v244 = vmul.f32 %v229, %v240
  %s245 = scalar_lea.vmem %s4, 1
  %v246 = vld [vmem:[%s245] ss:$4 sm:$0x3]
  %v248 = vlaneseq
  %v249 = vshrl.u32 %v248, 7
  %v250 = vsub.s32 0, %v249
  %v251 = vrot.slane %v246, %v250
  %v252 = vlaneseq
  %v253 = vshrl.u32 %v252, 7
  %v254 = vsub.s32 1, %v253
  %v255 = vrot.slane %v246, %v254
  %v258 = vsub.f32 %v251, %v35
  %v259 = vsub.f32 %v255, %v36
  %s260 = scalar_lea.vmem %s6, 1
  %v261 = vld [vmem:[%s260] ss:$4 sm:$0x3]
  %v263 = vlaneseq
  %v264 = vshrl.u32 %v263, 7
  %v265 = vsub.s32 0, %v264
  %v266 = vrot.slane %v261, %v265
  %v267 = vlaneseq
  %v268 = vshrl.u32 %v267, 7
  %v269 = vsub.s32 1, %v268
  %v270 = vrot.slane %v261, %v269
  %v273 = vmul.f32 %v258, %v266
  %v274 = vmul.f32 %v259, %v270
  %v275 = vmul.f32 %v243, %v243
  %v276 = vmul.f32 %v244, %v244
  %v277 = vand.u32 2147483647, %v243
  %v278 = vand.u32 2147483647, %v244
  %v279 = vmul.f32 %v277, 0.3275911
  %v280 = vmul.f32 %v278, 0.3275911
  %v281 = vadd.f32 %v279, 1.0
  %v282 = vadd.f32 %v280, 1.0
  %v283 = vrcp.pop %v281
  %v284 = vmul.f32 1.0, %v283
  %v285 = vrcp.pop %v282
  %v286 = vmul.f32 1.0, %v285
  %v287 = vmul.f32 %v284, 1.0614054
  %v288 = vmul.f32 %v286, 1.0614054
  %v289 = vadd.f32 %v287, -1.4531521
  %v290 = vadd.f32 %v288, -1.4531521
  %v291 = vmul.f32 %v284, %v289
  %v292 = vmul.f32 %v286, %v290
  %v293 = vadd.f32 %v291, 1.4214138
  %v294 = vadd.f32 %v292, 1.4214138
  %v295 = vmul.f32 %v284, %v293
  %v296 = vmul.f32 %v286, %v294
  %v297 = vadd.f32 %v295, -0.28449672
  %v298 = vadd.f32 %v296, -0.28449672
  %v299 = vmul.f32 %v284, %v297
  %v300 = vmul.f32 %v286, %v298
  %v301 = vadd.f32 %v299, 0.2548296
  %v302 = vadd.f32 %v300, 0.2548296
  %v303 = vmul.f32 %v284, %v301
  %v304 = vmul.f32 %v286, %v302
  %v305 = vsub.f32 0.0, %v275
  %v306 = vsub.f32 0.0, %v276
  %v307 = vmul.f32 %v305, 1.442695
  %v308 = vpow.pop %v307
  %v309 = vmul.f32 %v306, 1.442695
  %v310 = vpow.pop %v309
  %v311 = vmul.f32 %v303, %v308
  %v312 = vmul.f32 %v304, %v310
  %vm313 = vcmp.ge.f32.partialorder %v243, 0.0
  %vm314 = vcmp.ge.f32.partialorder %v244, 0.0
  %v315 = vsub.f32 2.0, %v311
  %v316 = vsub.f32 2.0, %v312
  %v317 = vsel %vm313, %v311, %v315
  %v318 = vsel %vm314, %v312, %v316
  %v319 = vmax.f32 %v317, 2e-15
  %v320 = vmax.f32 %v318, 2e-15
  %v321 = vlog2.pop %v319
  %v322 = vmul.f32 %v321, 0.6931472
  %v323 = vlog2.pop %v320
  %v324 = vmul.f32 %v323, 0.6931472
  %v325 = vadd.f32 %v322, %v324
  %326 = vadd.xlane.f32.xlu0 %v325
  %v327 = vpop.xlane.xlu0 %326
  %v328 = vadd.f32 %v327, -177.44568
  %v329 = vadd.f32 %v275, %v276
  %330 = vadd.xlane.f32.xlu0 %v329
  %v331 = vpop.xlane.xlu0 %330
  %v332 = vmul.f32 %v273, %v273
  %v333 = vmul.f32 %v274, %v274
  %v334 = vand.u32 2147483647, %v273
  %v335 = vand.u32 2147483647, %v274
  %v336 = vmul.f32 %v334, 0.3275911
  %v337 = vmul.f32 %v335, 0.3275911
  %v338 = vadd.f32 %v336, 1.0
  %v339 = vadd.f32 %v337, 1.0
  %v340 = vrcp.pop %v338
  %v341 = vmul.f32 1.0, %v340
  %v342 = vrcp.pop %v339
  %v343 = vmul.f32 1.0, %v342
  %v344 = vmul.f32 %v341, 1.0614054
  %v345 = vmul.f32 %v343, 1.0614054
  %v346 = vadd.f32 %v344, -1.4531521
  %v347 = vadd.f32 %v345, -1.4531521
  %v348 = vmul.f32 %v341, %v346
  %v349 = vmul.f32 %v343, %v347
  %v350 = vadd.f32 %v348, 1.4214138
  %v351 = vadd.f32 %v349, 1.4214138
  %v352 = vmul.f32 %v341, %v350
  %v353 = vmul.f32 %v343, %v351
  %v354 = vadd.f32 %v352, -0.28449672
  %v355 = vadd.f32 %v353, -0.28449672
  %v356 = vmul.f32 %v341, %v354
  %v357 = vmul.f32 %v343, %v355
  %v358 = vadd.f32 %v356, 0.2548296
  %v359 = vadd.f32 %v357, 0.2548296
  %v360 = vmul.f32 %v341, %v358
  %v361 = vmul.f32 %v343, %v359
  %v362 = vsub.f32 0.0, %v332
  %v363 = vsub.f32 0.0, %v333
  %v364 = vmul.f32 %v362, 1.442695
  %v365 = vpow.pop %v364
  %v366 = vmul.f32 %v363, 1.442695
  %v367 = vpow.pop %v366
  %v368 = vmul.f32 %v360, %v365
  %v369 = vmul.f32 %v361, %v367
  %vm370 = vcmp.ge.f32.partialorder %v273, 0.0
  %vm371 = vcmp.ge.f32.partialorder %v274, 0.0
  %v372 = vsub.f32 2.0, %v368
  %v373 = vsub.f32 2.0, %v369
  %v374 = vsel %vm370, %v368, %v372
  %v375 = vsel %vm371, %v369, %v373
  %v376 = vmax.f32 %v374, 2e-15
  %v377 = vmax.f32 %v375, 2e-15
  %v378 = vlog2.pop %v376
  %v379 = vmul.f32 %v378, 0.6931472
  %v380 = vlog2.pop %v377
  %v381 = vmul.f32 %v380, 0.6931472
  %v382 = vadd.f32 %v379, %v381
  %383 = vadd.xlane.f32.xlu0 %v382
  %v384 = vpop.xlane.xlu0 %383
  %v385 = vadd.f32 %v384, -177.44568
  %v386 = vadd.f32 %v332, %v333
  %387 = vadd.xlane.f32.xlu0 %v386
  %v388 = vpop.xlane.xlu0 %387
  %vm389 = vcmask 15368
  %390 = vst.msk [vmem:[%s7] sm:$0xff] %vm389, %v328
  %391 = vst.msk [vmem:[%s8] sm:$0xff] %vm389, %v385
  %s392 = sld [smem:[#allocation3 + $0x1]]
  %v393 = vadd.f32 %v331, %v388
  %v394 = vstv %s392
  %v395 = vsub.f32 %v394, %v393
  %396 = vst.msk [vmem:[%s9] sm:$0xff] %vm389, %v395
  %s397 = scalar_lea.vmem %s3, 2
  %v398 = vld [vmem:[%s397] ss:$4 sm:$0x3]
  %v400 = vlaneseq
  %v401 = vshrl.u32 %v400, 7
  %v402 = vsub.s32 0, %v401
  %v403 = vrot.slane %v398, %v402
  %v404 = vlaneseq
  %v405 = vshrl.u32 %v404, 7
  %v406 = vsub.s32 1, %v405
  %v407 = vrot.slane %v398, %v406
  %v410 = vsub.f32 %v403, %v33
  %v411 = vsub.f32 %v407, %v34
  %s412 = scalar_lea.vmem %s5, 2
  %v413 = vld [vmem:[%s412] ss:$4 sm:$0x3]
  %v415 = vlaneseq
  %v416 = vshrl.u32 %v415, 7
  %v417 = vsub.s32 0, %v416
  %v418 = vrot.slane %v413, %v417
  %v419 = vlaneseq
  %v420 = vshrl.u32 %v419, 7
  %v421 = vsub.s32 1, %v420
  %v422 = vrot.slane %v413, %v421
  %v425 = vmul.f32 %v410, %v418
  %v426 = vmul.f32 %v411, %v422
  %s427 = scalar_lea.vmem %s4, 2
  %v428 = vld [vmem:[%s427] ss:$4 sm:$0x3]
  %v430 = vlaneseq
  %v431 = vshrl.u32 %v430, 7
  %v432 = vsub.s32 0, %v431
  %v433 = vrot.slane %v428, %v432
  %v434 = vlaneseq
  %v435 = vshrl.u32 %v434, 7
  %v436 = vsub.s32 1, %v435
  %v437 = vrot.slane %v428, %v436
  %v440 = vsub.f32 %v433, %v35
  %v441 = vsub.f32 %v437, %v36
  %s442 = scalar_lea.vmem %s6, 2
  %v443 = vld [vmem:[%s442] ss:$4 sm:$0x3]
  %v445 = vlaneseq
  %v446 = vshrl.u32 %v445, 7
  %v447 = vsub.s32 0, %v446
  %v448 = vrot.slane %v443, %v447
  %v449 = vlaneseq
  %v450 = vshrl.u32 %v449, 7
  %v451 = vsub.s32 1, %v450
  %v452 = vrot.slane %v443, %v451
  %v455 = vmul.f32 %v440, %v448
  %v456 = vmul.f32 %v441, %v452
  %v457 = vmul.f32 %v425, %v425
  %v458 = vmul.f32 %v426, %v426
  %v459 = vand.u32 2147483647, %v425
  %v460 = vand.u32 2147483647, %v426
  %v461 = vmul.f32 %v459, 0.3275911
  %v462 = vmul.f32 %v460, 0.3275911
  %v463 = vadd.f32 %v461, 1.0
  %v464 = vadd.f32 %v462, 1.0
  %v465 = vrcp.pop %v463
  %v466 = vmul.f32 1.0, %v465
  %v467 = vrcp.pop %v464
  %v468 = vmul.f32 1.0, %v467
  %v469 = vmul.f32 %v466, 1.0614054
  %v470 = vmul.f32 %v468, 1.0614054
  %v471 = vadd.f32 %v469, -1.4531521
  %v472 = vadd.f32 %v470, -1.4531521
  %v473 = vmul.f32 %v466, %v471
  %v474 = vmul.f32 %v468, %v472
  %v475 = vadd.f32 %v473, 1.4214138
  %v476 = vadd.f32 %v474, 1.4214138
  %v477 = vmul.f32 %v466, %v475
  %v478 = vmul.f32 %v468, %v476
  %v479 = vadd.f32 %v477, -0.28449672
  %v480 = vadd.f32 %v478, -0.28449672
  %v481 = vmul.f32 %v466, %v479
  %v482 = vmul.f32 %v468, %v480
  %v483 = vadd.f32 %v481, 0.2548296
  %v484 = vadd.f32 %v482, 0.2548296
  %v485 = vmul.f32 %v466, %v483
  %v486 = vmul.f32 %v468, %v484
  %v487 = vsub.f32 0.0, %v457
  %v488 = vsub.f32 0.0, %v458
  %v489 = vmul.f32 %v487, 1.442695
  %v490 = vpow.pop %v489
  %v491 = vmul.f32 %v488, 1.442695
  %v492 = vpow.pop %v491
  %v493 = vmul.f32 %v485, %v490
  %v494 = vmul.f32 %v486, %v492
  %vm495 = vcmp.ge.f32.partialorder %v425, 0.0
  %vm496 = vcmp.ge.f32.partialorder %v426, 0.0
  %v497 = vsub.f32 2.0, %v493
  %v498 = vsub.f32 2.0, %v494
  %v499 = vsel %vm495, %v493, %v497
  %v500 = vsel %vm496, %v494, %v498
  %v501 = vmax.f32 %v499, 2e-15
  %v502 = vmax.f32 %v500, 2e-15
  %v503 = vlog2.pop %v501
  %v504 = vmul.f32 %v503, 0.6931472
  %v505 = vlog2.pop %v502
  %v506 = vmul.f32 %v505, 0.6931472
  %v507 = vadd.f32 %v504, %v506
  %508 = vadd.xlane.f32.xlu0 %v507
  %v509 = vpop.xlane.xlu0 %508
  %v510 = vadd.f32 %v509, -177.44568
  %v511 = vadd.f32 %v457, %v458
  %512 = vadd.xlane.f32.xlu0 %v511
  %v513 = vpop.xlane.xlu0 %512
  %v514 = vmul.f32 %v455, %v455
  %v515 = vmul.f32 %v456, %v456
  %v516 = vand.u32 2147483647, %v455
  %v517 = vand.u32 2147483647, %v456
  %v518 = vmul.f32 %v516, 0.3275911
  %v519 = vmul.f32 %v517, 0.3275911
  %v520 = vadd.f32 %v518, 1.0
  %v521 = vadd.f32 %v519, 1.0
  %v522 = vrcp.pop %v520
  %v523 = vmul.f32 1.0, %v522
  %v524 = vrcp.pop %v521
  %v525 = vmul.f32 1.0, %v524
  %v526 = vmul.f32 %v523, 1.0614054
  %v527 = vmul.f32 %v525, 1.0614054
  %v528 = vadd.f32 %v526, -1.4531521
  %v529 = vadd.f32 %v527, -1.4531521
  %v530 = vmul.f32 %v523, %v528
  %v531 = vmul.f32 %v525, %v529
  %v532 = vadd.f32 %v530, 1.4214138
  %v533 = vadd.f32 %v531, 1.4214138
  %v534 = vmul.f32 %v523, %v532
  %v535 = vmul.f32 %v525, %v533
  %v536 = vadd.f32 %v534, -0.28449672
  %v537 = vadd.f32 %v535, -0.28449672
  %v538 = vmul.f32 %v523, %v536
  %v539 = vmul.f32 %v525, %v537
  %v540 = vadd.f32 %v538, 0.2548296
  %v541 = vadd.f32 %v539, 0.2548296
  %v542 = vmul.f32 %v523, %v540
  %v543 = vmul.f32 %v525, %v541
  %v544 = vsub.f32 0.0, %v514
  %v545 = vsub.f32 0.0, %v515
  %v546 = vmul.f32 %v544, 1.442695
  %v547 = vpow.pop %v546
  %v548 = vmul.f32 %v545, 1.442695
  %v549 = vpow.pop %v548
  %v550 = vmul.f32 %v542, %v547
  %v551 = vmul.f32 %v543, %v549
  %vm552 = vcmp.ge.f32.partialorder %v455, 0.0
  %vm553 = vcmp.ge.f32.partialorder %v456, 0.0
  %v554 = vsub.f32 2.0, %v550
  %v555 = vsub.f32 2.0, %v551
  %v556 = vsel %vm552, %v550, %v554
  %v557 = vsel %vm553, %v551, %v555
  %v558 = vmax.f32 %v556, 2e-15
  %v559 = vmax.f32 %v557, 2e-15
  %v560 = vlog2.pop %v558
  %v561 = vmul.f32 %v560, 0.6931472
  %v562 = vlog2.pop %v559
  %v563 = vmul.f32 %v562, 0.6931472
  %v564 = vadd.f32 %v561, %v563
  %565 = vadd.xlane.f32.xlu0 %v564
  %v566 = vpop.xlane.xlu0 %565
  %v567 = vadd.f32 %v566, -177.44568
  %v568 = vadd.f32 %v514, %v515
  %569 = vadd.xlane.f32.xlu0 %v568
  %v570 = vpop.xlane.xlu0 %569
  %vm571 = vcmask 23568
  %572 = vst.msk [vmem:[%s7] sm:$0xff] %vm571, %v510
  %573 = vst.msk [vmem:[%s8] sm:$0xff] %vm571, %v567
  %s574 = sld [smem:[#allocation3 + $0x2]]
  %v575 = vadd.f32 %v513, %v570
  %v576 = vstv %s574
  %v577 = vsub.f32 %v576, %v575
  %578 = vst.msk [vmem:[%s9] sm:$0xff] %vm571, %v577
  // Predicated region
  $region26: #{copula_loss.2} parent=0 // pred_check
    _
  $region27: #{copula_loss.2} parent=0 // pred_check_branch
    %580 = sbr.rel (0) target = $region29
  $region28: #{copula_loss.2} parent=0 // pred_region
    _
  $region29: #{copula_loss.2} parent=0 // pred_fallthru
    _
  // Predicated region
  $region30: #{copula_loss.2} parent=0 // pred_check
    _
  $region31: #{copula_loss.2} parent=0 // pred_check_branch
    %582 = sbr.rel (0) target = $region33
  $region32: #{copula_loss.2} parent=0 // pred_region
    _
  $region33: #{copula_loss.2} parent=0 // pred_fallthru
    _
  // Predicated region
  $region34: #{copula_loss.2} parent=0 // pred_check
    _
  $region35: #{copula_loss.2} parent=0 // pred_check_branch
    %584 = sbr.rel (0) target = $region37
  $region36: #{copula_loss.2} parent=0 // pred_region
    _
  $region37: #{copula_loss.2} parent=0 // pred_fallthru
    _
  // Predicated region
  $region38: #{copula_loss.2} parent=0 // pred_check
    _
  $region39: #{copula_loss.2} parent=0 // pred_check_branch
    %586 = sbr.rel (0) target = $region41
  $region40: #{copula_loss.2} parent=0 // pred_region
    _
  $region41: #{copula_loss.2} parent=0 // pred_fallthru
    _
  // Predicated region
  $region42: #{copula_loss.2} parent=0 // pred_check
    _
  $region43: #{copula_loss.2} parent=0 // pred_check_branch
    %588 = sbr.rel (0) target = $region45
  $region44: #{copula_loss.2} parent=0 // pred_region
    _
  $region45: #{copula_loss.2} parent=0 // pred_fallthru
    _
  // Predicated region
  $region46: #{copula_loss.2} parent=0 // pred_check
    _
  $region47: #{copula_loss.2} parent=0 // pred_check_branch
    %590 = sbr.rel (0) target = $region49
  $region48: #{copula_loss.2} parent=0 // pred_region
    _
  $region49: #{copula_loss.2} parent=0 // pred_fallthru
    _

</llo_original>
